<compile_context>
chip_gen: v5e
topology: v5e:2x2
jax: 0.10.0
libtpu: 0.0.40
codegen_flags: <defaults>
</compile_context>

<pallas_src>
import functools

import jax
import jax.numpy as jnp
from jax.experimental import pallas as pl
from jax.experimental.pallas import tpu as pltpu

LANES = 128            # lane width (last dim of every tile)
MAX_TILE_ROWS = 2048   # (2048, 128) fp32 = 1 MiB per block


def _make_kernel(gan_type, target_val, sign, n, tile_rows, tiles_per_chunk,
                 nchunks, has_tail):
    """Build the kernel body.  All arguments are Python statics."""
    n_full_rows = n // LANES            # rows fully covered by valid elements
    n_lane_rem = n % LANES              # valid lanes in the single partial row
    last_tile_row0 = (nchunks * tiles_per_chunk - 1) * tile_rows

    def transform(xv):
        if gan_type in ("gan", "ragan"):
            # numerically-stable BCEWithLogits against a constant target y:
            #   max(x, 0) - x*y + log(1 + exp(-|x|))
            y = jnp.float32(target_val)
            return (jnp.maximum(xv, 0.0) - xv * y
                    + jnp.log1p(jnp.exp(-jnp.abs(xv))))
        elif gan_type == "lsgan":
            d = xv - jnp.float32(target_val)
            return d * d
        else:  # wgan-gp: -mean(x) if real else mean(x)
            return jnp.float32(sign) * xv

    def kernel(x_ref, o_ref):
        p = pl.program_id(0)   # parallel chunk (sharded across TCs on v7x)
        t = pl.program_id(1)   # sequential reduction step within the chunk

        @pl.when(t == 0)
        def _():
            o_ref[...] = jnp.zeros_like(o_ref)

        def accumulate(masked):
            elem = transform(x_ref[...].astype(jnp.float32))
            if masked:
                # Only ever executed for the single global-last tile.
                row_id = jax.lax.broadcasted_iota(
                    jnp.int32, (tile_rows, LANES), 0)
                lane_id = jax.lax.broadcasted_iota(
                    jnp.int32, (tile_rows, LANES), 1)
                grow = last_tile_row0 + row_id     # global row (int32-safe)
                valid = (grow < n_full_rows) | (
                    (grow == n_full_rows) & (lane_id < n_lane_rem))
                elem = jnp.where(valid, elem, 0.0)
            # VPU-only partial reduction into the vreg-shaped (8, 128) block.
            o_ref[...] += elem.reshape(tile_rows // 8, 8, LANES).sum(axis=0)

        if has_tail:
            is_last = (p == nchunks - 1) & (t == tiles_per_chunk - 1)

            @pl.when(jnp.logical_not(is_last))
            def _():
                accumulate(False)

            @pl.when(is_last)
            def _():
                accumulate(True)
        else:
            accumulate(False)

    return kernel


@functools.partial(jax.jit,
                   static_argnames=("target_is_real", "gan_type",
                                    "real_label_val", "fake_label_val"))
def gan_loss(x, target_is_real, gan_type="lsgan",
             real_label_val=1.0, fake_label_val=0.0):
    """Pallas equivalent of GANLoss.forward(input, target_is_real)."""
    gan_type = gan_type.lower()
    if gan_type not in ("gan", "ragan", "lsgan", "wgan-gp"):
        raise NotImplementedError(f"GAN type [{gan_type}] is not found")

    n = x.size
    xf = jnp.ravel(x)

    # Pad the flat vector only when n is not already a multiple of 8*128, so
    # the common aligned case pays no extra HBM round trip.
    pad_to = 8 * LANES
    total = ((n + pad_to - 1) // pad_to) * pad_to
    if total != n:
        xf = jnp.pad(xf, (0, total - n))
    rows = total // LANES
    x2 = xf.reshape(rows, LANES)

    tile_rows = min(MAX_TILE_ROWS, rows)       # multiple of 8 by construction
    total_tiles = -(-rows // tile_rows)        # cdiv
    # Megacore split: two independent partial sums when the tile count allows.
    nchunks = 2 if (total_tiles % 2 == 0 and total_tiles >= 2) else 1
    tiles_per_chunk = total_tiles // nchunks
    # Does the grid touch any element >= n (lane pad, pad rows, or the garbage
    # region of a partial last block)?
    has_tail = (total_tiles * tile_rows * LANES) != n

    if gan_type == "wgan-gp":
        target_val = 0.0
        sign = -1.0 if target_is_real else 1.0
    else:
        target_val = float(real_label_val if target_is_real else fake_label_val)
        sign = 1.0

    kernel = _make_kernel(gan_type, target_val, sign, n, tile_rows,
                          tiles_per_chunk, nchunks, has_tail)

    # NOTE: the gan/ragan (transcendental-heavy) path could optionally use
    # pipeline_mode=pl.Buffered(3) on the input spec; default double-buffering
    # already hides the DMA at this tile size, so keep it simple/portable.
    partial_sums = pl.pallas_call(
        kernel,
        out_shape=jax.ShapeDtypeStruct((nchunks, 8, LANES), jnp.float32),
        grid_spec=pltpu.PrefetchScalarGridSpec(
            num_scalar_prefetch=0,
            grid=(nchunks, tiles_per_chunk),
            in_specs=[pl.BlockSpec(
                (tile_rows, LANES),
                lambda p, t: (p * tiles_per_chunk + t, 0))],
            out_specs=pl.BlockSpec((None, 8, LANES), lambda p, t: (p, 0, 0)),
        ),
        compiler_params=pltpu.CompilerParams(
            dimension_semantics=("parallel", "arbitrary")),
    )(x2)

    return jnp.sum(partial_sums) / jnp.float32(n)


def _reference(x, target_is_real, gan_type, real_label_val=1.0,
               fake_label_val=0.0):
    x = x.astype(jnp.float32)
    if gan_type == "wgan-gp":
        return -jnp.mean(x) if target_is_real else jnp.mean(x)
    y = jnp.float32(real_label_val if target_is_real else fake_label_val)
    if gan_type == "lsgan":
        return jnp.mean((x - y) ** 2)
    # bce-with-logits (stable form)
    return jnp.mean(jnp.maximum(x, 0.0) - x * y
                    + jnp.log1p(jnp.exp(-jnp.abs(x))))


if __name__ == "__main__":
    key = jax.random.PRNGKey(0)
    shapes = [
        (2, 4, 16, 16),     # primary small shape: aligned, single tile
        (1, 3, 11, 7),      # ragged: exercises pad + tail-mask path
        (2, 4, 256, 256),   # multi-tile: exercises the 2-chunk parallel split
    ]
    ok = True
    for si, shape in enumerate(shapes):
        x = jax.random.normal(jax.random.fold_in(key, si), shape,
                              dtype=jnp.float32)
        for gan_type in ("gan", "ragan", "lsgan", "wgan-gp"):
            for target_is_real in (True, False):
                got = jax.block_until_ready(
                    gan_loss(x, target_is_real, gan_type=gan_type))
                want = _reference(x, target_is_real, gan_type)
                if not jnp.allclose(got, want, rtol=1e-5, atol=1e-5):
                    ok = False
                    print(f"MISMATCH shape={shape} {gan_type} "
                          f"real={target_is_real}: {got} vs {want}")

    if ok:
        print("KERNEL_OK")
</pallas_src>

<mosaic_0001>
module attributes {stable_mosaic.version = 11 : i64} {
  func.func @kernel(%arg0: i32, %arg1: i32, %arg2: memref<16x128xf32, #tpu.memory_space<vmem>>, %arg3: memref<1x8x128xf32, #tpu.memory_space<vmem>>) attributes {dimension_semantics = [#tpu.dimension_semantics<parallel>, #tpu.dimension_semantics<arbitrary>], iteration_bounds = array<i64: 1, 1>, scalar_prefetch = 0 : i64, scratch_operands = 0 : i64, tpu.core_type = #tpu.core_type<tc>, window_params = [{transform_indices = @transform_0, window_bounds = array<i64: 16, 128>}, {transform_indices = @transform_1, window_bounds = array<i64: 1, 8, 128>}]} {
    %c0_i32 = arith.constant 0 : i32
    %0 = arith.cmpi eq, %arg1, %c0_i32 : i32
    %1 = arith.extui %0 : i1 to i32
    %c0_i32_0 = arith.constant 0 : i32
    %2 = arith.cmpi ne, %1, %c0_i32_0 : i32
    scf.if %2 {
      %cst_11 = arith.constant 0.000000e+00 : f32
      %23 = vector.broadcast %cst_11 : f32 to vector<8x128xf32>
      %c0_12 = arith.constant 0 : index
      %c0_13 = arith.constant 0 : index
      %c0_14 = arith.constant 0 : index
      %24 = vector.load %arg3[%c0_12, %c0_13, %c0_14] : memref<1x8x128xf32, #tpu.memory_space<vmem>>, vector<1x8x128xf32>
      %25 = vector.shape_cast %24 : vector<1x8x128xf32> to vector<8x128xf32>
      %26 = vector.shape_cast %23 : vector<8x128xf32> to vector<1x8x128xf32>
      tpu.vector_store %arg3[%c0_12, %c0_13, %c0_14], %26 {strides = array<i32>} : memref<1x8x128xf32, #tpu.memory_space<vmem>>, vector<1x8x128xf32>,
    } else {
    }
    %c0 = arith.constant 0 : index
    %c0_1 = arith.constant 0 : index
    %3 = vector.load %arg2[%c0, %c0_1] : memref<16x128xf32, #tpu.memory_space<vmem>>, vector<16x128xf32>
    %cst = arith.constant 0.000000e+00 : f32
    %4 = vector.broadcast %cst : f32 to vector<16x128xf32>
    %5 = arith.maximumf %3, %4 : vector<16x128xf32>
    %cst_2 = arith.constant 1.000000e+00 : f32
    %6 = vector.broadcast %cst_2 : f32 to vector<16x128xf32>
    %7 = arith.mulf %3, %6 : vector<16x128xf32>
    %8 = arith.subf %5, %7 : vector<16x128xf32>
    %9 = math.absf %3 : vector<16x128xf32>
    %cst_3 = arith.constant 0.000000e+00 : f32
    %10 = vector.broadcast %cst_3 : f32 to vector<16x128xf32>
    %11 = arith.subf %10, %9 : vector<16x128xf32>
    %12 = math.exp %11 : vector<16x128xf32>
    %13 = math.log1p %12 : vector<16x128xf32>
    %14 = arith.addf %8, %13 : vector<16x128xf32>
    %c0_4 = arith.constant 0 : index
    %c0_5 = arith.constant 0 : index
    %c0_6 = arith.constant 0 : index
    %15 = vector.load %arg3[%c0_4, %c0_5, %c0_6] : memref<1x8x128xf32, #tpu.memory_space<vmem>>, vector<1x8x128xf32>
    %16 = vector.shape_cast %15 : vector<1x8x128xf32> to vector<8x128xf32>
    %17 = vector.shape_cast %14 : vector<16x128xf32> to vector<2x8x128xf32>
    %cst_7 = arith.constant dense<0.000000e+00> : vector<8x128xf32>
    %18 = vector.multi_reduction <add>, %17, %cst_7 [0] : vector<2x8x128xf32> to vector<8x128xf32>
    %19 = arith.addf %16, %18 : vector<8x128xf32>
    %c0_8 = arith.constant 0 : index
    %c0_9 = arith.constant 0 : index
    %c0_10 = arith.constant 0 : index
    %20 = vector.load %arg3[%c0_8, %c0_9, %c0_10] : memref<1x8x128xf32, #tpu.memory_space<vmem>>, vector<1x8x128xf32>
    %21 = vector.shape_cast %20 : vector<1x8x128xf32> to vector<8x128xf32>
    %22 = vector.shape_cast %19 : vector<8x128xf32> to vector<1x8x128xf32>
    tpu.vector_store %arg3[%c0_8, %c0_9, %c0_10], %22 {strides = array<i32>} : memref<1x8x128xf32, #tpu.memory_space<vmem>>, vector<1x8x128xf32>,
    return
  }
  func.func @transform_0(%arg0: i32, %arg1: i32) -> (i32, i32) {
    %c1_i32 = arith.constant 1 : i32
    %0 = arith.muli %arg0, %c1_i32 : i32
    %1 = arith.addi %0, %arg1 : i32
    %c0_i32 = arith.constant 0 : i32
    %c0_i32_0 = arith.constant 0 : i32
    return %1, %c0_i32 : i32, i32
  }
  func.func @transform_1(%arg0: i32, %arg1: i32) -> (i32, i32, i32) {
    %c0_i32 = arith.constant 0 : i32
    %c0_i32_0 = arith.constant 0 : i32
    %c0_i32_1 = arith.constant 0 : i32
    return %arg0, %c0_i32, %c0_i32_0 : i32, i32, i32
  }
}

</mosaic_0001>

<llo_original>
// kernel: gan_loss.1
$region0: #{gan_loss.1}
  #allocation0 [shape = 'u32[]', space=smem, size = 0x4, offset = 0x4, fixed_abs, tag = 'smem constant byte address 0x4 - core index']
  #allocation1 [shape = 'u32[72,128]{1,0:T(1,128)}', space=vmem, size = 0x9000, scoped, tag = 'internal scratch']
  %s0 = inlined_call_operand.vmem [shape: f32[16,128], index: 0, kind: input, shape index: {}]
  %s1 = inlined_call_operand.vmem [shape: f32[1,8,128], index: 1, kind: output, shape index: {}]
  %s2 = sld [smem:[#allocation0]]
  $region18: #{gan_loss.1} parent=0
    _
  %s4 = ssub.s32 1, %s2
  %s5 = scalar_select 0, %s4, %s2
  // Predicated region
  $region2: #{gan_loss.1} parent=0 // pred_check
    _
  $region3: #{gan_loss.1} parent=0 // pred_check_branch
    %7 = sbr.rel (0) target = $region5
  $region4: #{gan_loss.1} parent=0 // pred_region
    %s8 = sadd.s32 0, 0
    %s9 = smul.u32 2, %s8
    %p10 = scmp.lt.s32.totalorder %s9, 1
    %s11 = scalar_select %p10, %s9, 1
    %s12 = smul.addr %s11, 8
    %s13 = scalar_lea.vmem %s0, %s12
    %s14 = sadd.s32 0, 0
    %s15 = smul.u32 2, %s14
  $region5: #{gan_loss.1} parent=0 // pred_fallthru
    _
  %s16 = sadd.s32 0, 0
  %s17 = smul.u32 2, %s16
  %p18 = scmp.lt.s32.totalorder %s17, 1
  %s19 = scalar_select %p18, %s17, 1
  %s20 = smul.addr %s19, 8
  %s21 = scalar_lea.vmem %s0, %s20
  %s22 = sadd.s32 0, 0
  %s23 = smul.u32 2, %s22
  %p24 = scmp.lt.s32.totalorder %s23, 1
  %s25 = scalar_select %p24, %s23, 1
  %s26 = smul.addr %s25, 8
  %s27 = scalar_lea.vmem %s0, %s26
  %s28 = sadd.s32 0, 0
  %s29 = smul.u32 2, %s28
  %p30 = scmp.eq.s32.totalorder 0, 0
  // Predicated region
  $region6: #{gan_loss.1} parent=0 // pred_check
    %p31 = pneg %p30
  $region7: #{gan_loss.1} parent=0 // pred_check_branch
    %33 = sbr.rel (%p31) target = $region9
  $region8: #{gan_loss.1} parent=0 // pred_region
    %34 = vst [vmem:[%s1] sm:$0xff] 0.0
  $region9: #{gan_loss.1} parent=0 // pred_fallthru
    _
  %v35 = vld [vmem:[%s27] sm:$0xff]
  %v36 = vld [vmem:[%s27 + $0x8] sm:$0xff]
  %v37 = vmax.f32 %v35, 0.0
  %v38 = vmax.f32 %v36, 0.0
  %v39 = vsub.f32 %v37, %v35
  %v40 = vsub.f32 %v38, %v36
  %v41 = vand.u32 2147483647, %v35
  %v42 = vand.u32 2147483647, %v36
  %v43 = vsub.f32 0.0, %v41
  %v44 = vsub.f32 0.0, %v42
  %v45 = vmul.f32 %v43, 1.442695
  %v46 = vpow.pop %v45
  %v47 = vmul.f32 %v44, 1.442695
  %v48 = vpow.pop %v47
  %v49 = vadd.f32 %v46, 1.0
  %v50 = vlog2.pop %v49
  %v51 = vmul.f32 %v50, 0.6931472
  %v52 = vmul.f32 -0.5, %v46
  %v53 = vadd.f32 %v52, 1.0
  %v54 = vmul.f32 %v53, %v46
  %v55 = vand.u32 2147483647, %v46
  %vm56 = vcmp.lt.f32.partialorder %v55, 0.0004427343
  %v57 = vsel %vm56, %v54, %v51
  %v58 = vadd.f32 %v48, 1.0
  %v59 = vlog2.pop %v58
  %v60 = vmul.f32 %v59, 0.6931472
  %v61 = vmul.f32 -0.5, %v48
  %v62 = vadd.f32 %v61, 1.0
  %v63 = vmul.f32 %v62, %v48
  %v64 = vand.u32 2147483647, %v48
  %vm65 = vcmp.lt.f32.partialorder %v64, 0.0004427343
  %v66 = vsel %vm65, %v63, %v60
  %v67 = vadd.f32 %v39, %v57
  %v68 = vadd.f32 %v40, %v66
  %v69 = vld [vmem:[%s1] sm:$0xff]
  %v70 = vadd.f32 %v67, %v68
  %v71 = vadd.f32 %v69, %v70
  %72 = vst [vmem:[%s1] sm:$0xff] %v71
  // Predicated region
  $region10: #{gan_loss.1} parent=0 // pred_check
    _
  $region11: #{gan_loss.1} parent=0 // pred_check_branch
    %74 = sbr.rel (0) target = $region13
  $region12: #{gan_loss.1} parent=0 // pred_region
    _
  $region13: #{gan_loss.1} parent=0 // pred_fallthru
    _
  // Predicated region
  $region14: #{gan_loss.1} parent=0 // pred_check
    _
  $region15: #{gan_loss.1} parent=0 // pred_check_branch
    %76 = sbr.rel (0) target = $region17
  $region16: #{gan_loss.1} parent=0 // pred_region
    _
  $region17: #{gan_loss.1} parent=0 // pred_fallthru
    _

</llo_original>
